<compile_context>
chip_gen: v5e
topology: v5e:2x2
jax: 0.10.0
libtpu: 0.0.40
codegen_flags: <defaults>
</compile_context>

<pallas_src>
import functools

import jax
import jax.numpy as jnp
from jax.experimental import pallas as pl
from jax.experimental.pallas import tpu as pltpu


def attention_kernel(hidden_ref, enc_ref, mask_ref, wh_ref, we_ref, b_ref, v_ref,
                     out_ref, hb_ref, sc_ref, *, matmul_dtype, energy_dtype):
    """Grid = (batch_tiles, src_len_tiles).

    hidden_ref: [tile_b, D]            input dtype (cast in-kernel)
    enc_ref:    [tile_s, tile_b, E2]   input dtype (cast in-kernel) -- native [S, B, E2]
    mask_ref:   [tile_b, S]            int32, native batch-major layout, resident over s
    wh_ref:     [D, D]                 w_attn[:, :D]    (matmul dtype)
    we_ref:     [E2, D]                w_attn[:, D:].T  (matmul dtype)
    b_ref:      [1, D]                 f32
    v_ref:      [1, D]                 f32
    out_ref:    [tile_b, S]            f32, batch-major, written once at the last s step
    hb_ref:     [tile_b, D]            f32 VMEM scratch (hidden projection + bias)
    sc_ref:     [S, tile_b]            f32 VMEM scratch (per-batch-tile score accumulator)
    """
    s_idx = pl.program_id(1)
    tile_s, tile_b, E2 = enc_ref.shape
    D = wh_ref.shape[0]

    # hidden @ Wh^T + bias: computed once per batch tile (first src_len step) into VMEM
    # scratch, so it is neither recomputed nor re-broadcast twice every step.
    @pl.when(s_idx == 0)
    def _():
        h = hidden_ref[...].astype(matmul_dtype)
        hb_ref[...] = (
            jax.lax.dot_general(h, wh_ref[...],
                                dimension_numbers=(((1,), (1,)), ((), ())),
                                preferred_element_type=jnp.float32)
            + b_ref[...])

    # Encoder projection on the MXU.  The dtype cast happens here, after the VMEM load,
    # so the wrapper never does an extra HBM round trip on the dominant tensor.
    enc = enc_ref[...].astype(matmul_dtype)
    if tile_b % 8 == 0:
        # Collapse the leading dims -> one big-M matmul (layout-free merge when the
        # batch tile is sublane-aligned).  Much better MXU occupancy than tile_s
        # narrow [tile_b, E2] x [E2, D] matmuls.
        e_proj = jax.lax.dot_general(
            enc.reshape(tile_s * tile_b, E2), we_ref[...],
            dimension_numbers=(((1,), (0,)), ((), ())),
            preferred_element_type=jnp.float32).reshape(tile_s, tile_b, D)
    else:
        # Tiny-batch fallback (tile_b not a multiple of 8): batched-free 3-D contraction.
        e_proj = jax.lax.dot_general(
            enc, we_ref[...],
            dimension_numbers=(((2,), (0,)), ((), ())),
            preferred_element_type=jnp.float32)

    # energy = tanh(enc_proj + (hidden_proj + bias)): single fused broadcast add.
    pre = e_proj + hb_ref[...][None, :, :]
    if jnp.dtype(energy_dtype) == jnp.dtype(jnp.float32):
        energy = jnp.tanh(pre)                                      # f32 EUP (all gens)
    else:
        # bf16 EUP tanh (v6e/v7x fast path); the reduction below accumulates in f32.
        energy = jnp.tanh(pre.astype(energy_dtype)).astype(jnp.float32)

    # v-projection as VPU multiply + lane reduction (avoids an N=1 MXU matmul).
    scores = jnp.sum(energy * v_ref[...][None, :, :], axis=-1)      # [tile_s, tile_b] f32

    # Accumulate this src_len slab into the per-batch-tile VMEM score scratch.
    off = pl.multiple_of(s_idx * tile_s, tile_s)
    sc_ref[pl.ds(off, tile_s), :] = scores

    # Last src_len step: masked, numerically-stable softmax over src_len, written out
    # as one lane-dense batch-major [tile_b, S] block.
    @pl.when(s_idx == pl.num_programs(1) - 1)
    def _():
        sc = jnp.transpose(sc_ref[...])                             # [tile_b, S], one XLU transpose
        sc = jnp.where(mask_ref[...] == 0, jnp.float32(-10000000000.0), sc)
        m = jnp.max(sc, axis=1, keepdims=True)
        e = jnp.exp(sc - m)
        denom = jnp.sum(e, axis=1, keepdims=True)                   # [tile_b, 1]
        inv = pl.reciprocal(denom, approx=True)                     # EUP slot, nearly free
        inv = inv * (2.0 - denom * inv)                             # one Newton step -> ~f32 accuracy
        out_ref[...] = e * inv


def _vmem_budget_bytes():
    """~75% of this generation's physical VMEM (v5e/v6e: 128 MiB, v7x: 64 MiB)."""
    cap = 64 * 2**20                      # conservative fallback (v7x)
    try:
        info = pltpu.get_tpu_info()
        cap = int(getattr(info, "vmem_capacity_bytes", cap)) or cap
    except Exception:
        pass
    return int(cap * 3 // 4)


def _pick_tile_b(B):
    # Batch sits in the SUBLANE dim of every block (batch-major layout), so a partial
    # batch tile only needs to be a multiple of 8.  Prefer >= 2 tiles so the "parallel"
    # batch axis can shard across both v7x TensorCores (negligible cost on 1-TC chips).
    if B % 16 == 0:
        return B // 2
    if B % 8 == 0 and B > 8:
        return 8
    return B


def _estimate_vmem_bytes(S, tile_s, tile_b, E2, D, enc_bytes, mm_bytes):
    return int(
        2 * tile_s * tile_b * E2 * enc_bytes        # double-buffered encoder input tiles
        + tile_s * tile_b * E2 * mm_bytes           # in-kernel cast copy
        + 3 * tile_s * tile_b * D * 4               # e_proj / pre / energy f32 temporaries
        + 2 * tile_b * S * 4                        # resident mask + output blocks
        + S * tile_b * 4                            # score scratch
        + 2 * tile_b * S * 4                        # softmax temporaries at the final step
        + (D * D + E2 * D) * mm_bytes + 8 * D       # weights / bias / v
        + tile_b * D * 4                            # hidden-projection scratch
        + (2 << 20))                                # slack for Mosaic internal scratch


def _pick_tile_s(S, tile_b, E2, D, enc_bytes, mm_bytes, budget):
    # Largest divisor of S whose full working set (including f32 intermediates) fits the
    # per-generation VMEM budget; prefer sublane-aligned (multiple-of-8) slabs.
    fits = [d for d in range(1, S + 1)
            if S % d == 0
            and _estimate_vmem_bytes(S, d, tile_b, E2, D, enc_bytes, mm_bytes) <= budget]
    if not fits:
        return 1
    aligned = [d for d in fits if d % 8 == 0]
    return max(aligned) if aligned else max(fits)


def attention_forward(hidden, encoder_outputs, mask, w_attn, b_attn, w_v,
                      *, block_s=None, matmul_dtype=jnp.float32,
                      energy_dtype=jnp.float32):
    """hidden [B, D], encoder_outputs [S, B, 2*enc_hid] (native layout), mask [B, S].

    Returns the softmax attention weights [B, S] (float32).
    """
    S, B, E2 = encoder_outputs.shape
    D = hidden.shape[1]
    assert w_attn.shape == (D, D + E2)
    enc_bytes = encoder_outputs.dtype.itemsize
    mm_bytes = jnp.dtype(matmul_dtype).itemsize

    budget = _vmem_budget_bytes()
    tile_b = _pick_tile_b(B)
    tile_s = block_s if block_s is not None else _pick_tile_s(
        S, tile_b, E2, D, enc_bytes, mm_bytes, budget)
    assert S % tile_s == 0 and B % tile_b == 0
    n_b, n_s = B // tile_b, S // tile_s

    # Parameter prep — tiny tensors only.  The big encoder tensor and the mask are
    # passed through in their native layouts: no wrapper-side transpose and no
    # wrapper-side dtype cast of the dominant tensor.
    w_h = w_attn[:, :D].astype(matmul_dtype)                  # [D, D]; kernel contracts dim 1
    w_e = jnp.transpose(w_attn[:, D:]).astype(matmul_dtype)   # [E2, D] (a few KiB, one-time)
    bias = b_attn.reshape(1, D).astype(jnp.float32)
    v_row = w_v.reshape(1, D).astype(jnp.float32)
    mask_i = mask.astype(jnp.int32)                           # native [B, S]

    kernel = functools.partial(attention_kernel,
                               matmul_dtype=matmul_dtype,
                               energy_dtype=energy_dtype)

    cost = pl.CostEstimate(
        flops=2 * S * B * E2 * D + 2 * B * D * D + 4 * S * B * D,
        transcendentals=S * B * D + B * S,
        bytes_accessed=(S * B * E2 * enc_bytes + 2 * B * S * 4
                        + B * D * enc_bytes + (D * D + E2 * D) * mm_bytes),
    )

    out = pl.pallas_call(
        kernel,
        out_shape=jax.ShapeDtypeStruct((B, S), jnp.float32),
        grid=(n_b, n_s),
        in_specs=[
            pl.BlockSpec((tile_b, D), lambda b, s: (b, 0)),              # hidden
            pl.BlockSpec((tile_s, tile_b, E2), lambda b, s: (s, b, 0)),  # encoder outputs (native)
            pl.BlockSpec((tile_b, S), lambda b, s: (b, 0)),              # mask (native [B, S])
            pl.BlockSpec((D, D), lambda b, s: (0, 0)),                   # Wh (stays resident)
            pl.BlockSpec((E2, D), lambda b, s: (0, 0)),                  # We (stays resident)
            pl.BlockSpec((1, D), lambda b, s: (0, 0)),                   # bias
            pl.BlockSpec((1, D), lambda b, s: (0, 0)),                   # v
        ],
        out_specs=pl.BlockSpec((tile_b, S), lambda b, s: (b, 0)),        # batch-major, resident over s
        scratch_shapes=[pltpu.VMEM((tile_b, D), jnp.float32),            # hidden proj + bias
                        pltpu.VMEM((S, tile_b), jnp.float32)],           # score accumulator
        compiler_params=pltpu.CompilerParams(
            dimension_semantics=("parallel", "arbitrary"),
            vmem_limit_bytes=budget,                                     # always explicit (v5e default is 16 MiB)
        ),
        cost_estimate=cost,
    )(hidden, encoder_outputs, mask_i, w_h, w_e, bias, v_row)

    return out


def attention_reference(hidden, encoder_outputs, mask, w_attn, b_attn, w_v):
    """Pure-JAX (f32) mirror of the PyTorch forward, for verification."""
    S = encoder_outputs.shape[0]
    hid_rep = jnp.repeat(hidden[:, None, :], S, axis=1)          # [B, S, D]
    enc = jnp.transpose(encoder_outputs, (1, 0, 2))              # [B, S, E2]
    cat = jnp.concatenate((hid_rep, enc), axis=2)                # [B, S, D+E2]
    energy = jnp.tanh(jnp.einsum("bsc,dc->bsd", cat, w_attn) + b_attn)
    attention = jnp.einsum("bsd,od->bso", energy, w_v)[..., 0]   # [B, S]
    attention = jnp.where(mask == 0, -10000000000.0, attention)
    return jax.nn.softmax(attention, axis=1)


if __name__ == "__main__":
    def make_case(key, B, S, enc_hid_dim, dec_hid_dim, min_len):
        E2 = 2 * enc_hid_dim
        D = dec_hid_dim
        k1, k2, k3, k4, k5, k6 = jax.random.split(key, 6)
        # Deterministic synthetic parameters (shapes match nn.Linear in __init__).
        w_attn = jax.random.normal(k1, (D, D + E2), dtype=jnp.float32) * 0.1
        b_attn = jax.random.normal(k2, (D,), dtype=jnp.float32) * 0.1
        w_v = jax.random.normal(k3, (1, D), dtype=jnp.float32) * 0.1
        hidden = jax.random.normal(k4, (B, D), dtype=jnp.float32)
        enc = jax.random.normal(k5, (S, B, E2), dtype=jnp.float32)
        lengths = jax.random.randint(k6, (B,), min_len, S + 1)
        mask = (jnp.arange(S)[None, :] < lengths[:, None]).astype(jnp.int32)   # [B, S]
        return hidden, enc, mask, w_attn, b_attn, w_v

    key = jax.random.PRNGKey(0)
    k_a, k_b = jax.random.split(key)

    # Case A: tiny shapes (batch=2, src_len=16): full-batch tile (tile_b = 2), the 3-D
    # matmul fallback, and a 2-step src_len grid (block_s=8) so the accumulate-then-
    # softmax path is exercised.
    args_a = make_case(k_a, B=2, S=16, enc_hid_dim=16, dec_hid_dim=32, min_len=4)
    ref_a = attention_reference(*args_a)

    out_a = jax.block_until_ready(
        attention_forward(*args_a, block_s=8, matmul_dtype=jnp.float32))
    assert out_a.shape == ref_a.shape
    assert jnp.allclose(out_a, ref_a, atol=1e-4, rtol=1e-4), "case A f32 mismatch"

    # Same shapes on the bf16-MXU path with auto tile_s (single src step); the cast of
    # encoder_outputs happens inside the kernel.  tanh/exp/softmax stay f32.
    out_a16 = jax.block_until_ready(
        attention_forward(*args_a, matmul_dtype=jnp.bfloat16))
    assert jnp.allclose(out_a16, ref_a, atol=2e-2, rtol=2e-2), "case A bf16 mismatch"

    # Case B: batch=32 splits into two sublane-aligned batch tiles (tile_b = 16, so the
    # "parallel" axis can use both v7x TensorCores) and the collapsed big-M matmul path
    # is exercised; block_s=8 gives a 3-step src_len grid.
    args_b = make_case(k_b, B=32, S=24, enc_hid_dim=16, dec_hid_dim=32, min_len=6)
    ref_b = attention_reference(*args_b)

    out_b = jax.block_until_ready(
        attention_forward(*args_b, block_s=8, matmul_dtype=jnp.float32))
    assert jnp.allclose(out_b, ref_b, atol=1e-4, rtol=1e-4), "case B f32 mismatch"

    out_b16 = jax.block_until_ready(
        attention_forward(*args_b, block_s=8, matmul_dtype=jnp.bfloat16))
    assert jnp.allclose(out_b16, ref_b, atol=2e-2, rtol=2e-2), "case B bf16 mismatch"

    print("KERNEL_OK")
</pallas_src>

<mosaic_0001>
module attributes {stable_mosaic.version = 11 : i64} {
  func.func @attention_kernel(%arg0: i32, %arg1: i32, %arg2: memref<2x32xf32, #tpu.memory_space<vmem>>, %arg3: memref<8x2x32xf32, #tpu.memory_space<vmem>>, %arg4: memref<2x16xi32, #tpu.memory_space<vmem>>, %arg5: memref<32x32xf32, #tpu.memory_space<vmem>>, %arg6: memref<32x32xf32, #tpu.memory_space<vmem>>, %arg7: memref<1x32xf32, #tpu.memory_space<vmem>>, %arg8: memref<1x32xf32, #tpu.memory_space<vmem>>, %arg9: memref<2x16xf32, #tpu.memory_space<vmem>>, %arg10: memref<2x32xf32, #tpu.memory_space<vmem>>, %arg11: memref<16x2xf32, #tpu.memory_space<vmem>>) attributes {dimension_semantics = [#tpu.dimension_semantics<parallel>, #tpu.dimension_semantics<arbitrary>], iteration_bounds = array<i64: 1, 2>, scalar_prefetch = 0 : i64, scratch_operands = 2 : i64, tpu.core_type = #tpu.core_type<tc>, window_params = [{transform_indices = @transform_0, window_bounds = array<i64: 2, 32>}, {transform_indices = @transform_1, window_bounds = array<i64: 8, 2, 32>}, {transform_indices = @transform_2, window_bounds = array<i64: 2, 16>}, {pipeline_mode = #tpu.pipeline_mode<synchronous>, transform_indices = @transform_3, window_bounds = array<i64: 32, 32>}, {pipeline_mode = #tpu.pipeline_mode<synchronous>, transform_indices = @transform_4, window_bounds = array<i64: 32, 32>}, {pipeline_mode = #tpu.pipeline_mode<synchronous>, transform_indices = @transform_5, window_bounds = array<i64: 1, 32>}, {pipeline_mode = #tpu.pipeline_mode<synchronous>, transform_indices = @transform_6, window_bounds = array<i64: 1, 32>}, {transform_indices = @transform_7, window_bounds = array<i64: 2, 16>}]} {
    %c0_i32 = arith.constant 0 : i32
    %0 = arith.cmpi eq, %arg1, %c0_i32 : i32
    %1 = arith.extui %0 : i1 to i32
    %c0_i32_0 = arith.constant 0 : i32
    %2 = arith.cmpi ne, %1, %c0_i32_0 : i32
    scf.if %2 {
      %c0_12 = arith.constant 0 : index
      %c0_13 = arith.constant 0 : index
      %23 = vector.load %arg2[%c0_12, %c0_13] : memref<2x32xf32, #tpu.memory_space<vmem>>, vector<2x32xf32>
      %c0_14 = arith.constant 0 : index
      %c0_15 = arith.constant 0 : index
      %24 = vector.load %arg5[%c0_14, %c0_15] : memref<32x32xf32, #tpu.memory_space<vmem>>, vector<32x32xf32>
      %cst_16 = arith.constant dense<0.000000e+00> : vector<2x32xf32>
      %25 = tpu.matmul %23, %24, %cst_16 {dimension_numbers = #tpu.dot_dimension_numbers<[1], [1], [0], [0], [0, 0, 1, 0], [], []>} : vector<2x32xf32>, vector<32x32xf32>, vector<2x32xf32> -> vector<2x32xf32>
      %c0_17 = arith.constant 0 : index
      %c0_18 = arith.constant 0 : index
      %26 = vector.load %arg7[%c0_17, %c0_18] : memref<1x32xf32, #tpu.memory_space<vmem>>, vector<1x32xf32>
      %27 = vector.broadcast %26 : vector<1x32xf32> to vector<2x32xf32>
      %28 = arith.addf %25, %27 : vector<2x32xf32>
      %c0_19 = arith.constant 0 : index
      %c0_20 = arith.constant 0 : index
      %29 = vector.load %arg10[%c0_19, %c0_20] : memref<2x32xf32, #tpu.memory_space<vmem>>, vector<2x32xf32>
      tpu.vector_store %arg10[%c0_19, %c0_20], %28 {strides = array<i32>} : memref<2x32xf32, #tpu.memory_space<vmem>>, vector<2x32xf32>,
    } else {
    }
    %c0 = arith.constant 0 : index
    %c0_1 = arith.constant 0 : index
    %c0_2 = arith.constant 0 : index
    %3 = vector.load %arg3[%c0, %c0_1, %c0_2] : memref<8x2x32xf32, #tpu.memory_space<vmem>>, vector<8x2x32xf32>
    %c0_3 = arith.constant 0 : index
    %c0_4 = arith.constant 0 : index
    %4 = vector.load %arg6[%c0_3, %c0_4] : memref<32x32xf32, #tpu.memory_space<vmem>>, vector<32x32xf32>
    %cst = arith.constant dense<0.000000e+00> : vector<8x2x32xf32>
    %5 = tpu.matmul %3, %4, %cst {dimension_numbers = #tpu.dot_dimension_numbers<[2], [0], [0, 1], [1], [0, 0, 0, 1, 1, 1], [], []>} : vector<8x2x32xf32>, vector<32x32xf32>, vector<8x2x32xf32> -> vector<8x2x32xf32>
    %c0_5 = arith.constant 0 : index
    %c0_6 = arith.constant 0 : index
    %6 = vector.load %arg10[%c0_5, %c0_6] : memref<2x32xf32, #tpu.memory_space<vmem>>, vector<2x32xf32>
    %7 = vector.shape_cast %6 : vector<2x32xf32> to vector<1x2x32xf32>
    %8 = vector.broadcast %7 : vector<1x2x32xf32> to vector<8x2x32xf32>
    %9 = arith.addf %5, %8 : vector<8x2x32xf32>
    %10 = math.tanh %9 : vector<8x2x32xf32>
    %c0_7 = arith.constant 0 : index
    %c0_8 = arith.constant 0 : index
    %11 = vector.load %arg8[%c0_7, %c0_8] : memref<1x32xf32, #tpu.memory_space<vmem>>, vector<1x32xf32>
    %12 = vector.shape_cast %11 : vector<1x32xf32> to vector<1x1x32xf32>
    %13 = vector.broadcast %12 : vector<1x1x32xf32> to vector<8x2x32xf32>
    %14 = arith.mulf %10, %13 : vector<8x2x32xf32>
    %cst_9 = arith.constant dense<0.000000e+00> : vector<8x2xf32>
    %15 = vector.multi_reduction <add>, %14, %cst_9 [2] : vector<8x2x32xf32> to vector<8x2xf32>
    %c8_i32 = arith.constant 8 : i32
    %16 = arith.muli %arg1, %c8_i32 : i32
    %17 = tpu.assume_multiple %16, 8 : i32
    %18 = arith.index_cast %17 : i32 to index
    %c0_10 = arith.constant 0 : index
    %19 = vector.load %arg11[%18, %c0_10] : memref<16x2xf32, #tpu.memory_space<vmem>>, vector<8x2xf32>
    tpu.vector_store %arg11[%18, %c0_10], %15 {strides = array<i32>} : memref<16x2xf32, #tpu.memory_space<vmem>>, vector<8x2xf32>,
    %c1_i32 = arith.constant 1 : i32
    %20 = arith.cmpi eq, %arg1, %c1_i32 : i32
    %21 = arith.extui %20 : i1 to i32
    %c0_i32_11 = arith.constant 0 : i32
    %22 = arith.cmpi ne, %21, %c0_i32_11 : i32
    scf.if %22 {
      %c0_12 = arith.constant 0 : index
      %c0_13 = arith.constant 0 : index
      %23 = vector.load %arg11[%c0_12, %c0_13] : memref<16x2xf32, #tpu.memory_space<vmem>>, vector<16x2xf32>
      %24 = tpu.transpose %23, [1, 0] : vector<16x2xf32> -> vector<2x16xf32>
      %c0_14 = arith.constant 0 : index
      %c0_15 = arith.constant 0 : index
      %25 = vector.load %arg4[%c0_14, %c0_15] : memref<2x16xi32, #tpu.memory_space<vmem>>, vector<2x16xi32>
      %c0_i32_16 = arith.constant 0 : i32
      %26 = vector.broadcast %c0_i32_16 : i32 to vector<2x16xi32>
      %27 = arith.cmpi eq, %25, %26 : vector<2x16xi32>
      %cst_17 = arith.constant -1.000000e+10 : f32
      %28 = vector.broadcast %cst_17 : f32 to vector<2x16xf32>
      %29 = arith.select %27, %28, %24 : vector<2x16xi1>, vector<2x16xf32>
      %cst_18 = arith.constant dense<0xFF800000> : vector<2xf32>
      %30 = vector.multi_reduction <maximumf>, %29, %cst_18 [1] : vector<2x16xf32> to vector<2xf32>
      %31 = vector.shape_cast %30 : vector<2xf32> to vector<2x1xf32>
      %32 = vector.broadcast %31 : vector<2x1xf32> to vector<2x16xf32>
      %33 = arith.subf %29, %32 : vector<2x16xf32>
      %34 = math.exp %33 : vector<2x16xf32>
      %cst_19 = arith.constant dense<0.000000e+00> : vector<2xf32>
      %35 = vector.multi_reduction <add>, %34, %cst_19 [1] : vector<2x16xf32> to vector<2xf32>
      %36 = vector.shape_cast %35 : vector<2xf32> to vector<2x1xf32>
      %37 = tpu.reciprocal %36 {approx = true} : vector<2x1xf32> -> vector<2x1xf32>
      %38 = arith.mulf %36, %37 : vector<2x1xf32>
      %cst_20 = arith.constant 2.000000e+00 : f32
      %39 = vector.broadcast %cst_20 : f32 to vector<2x1xf32>
      %40 = arith.subf %39, %38 : vector<2x1xf32>
      %41 = arith.mulf %37, %40 : vector<2x1xf32>
      %42 = vector.broadcast %41 : vector<2x1xf32> to vector<2x16xf32>
      %43 = arith.mulf %34, %42 : vector<2x16xf32>
      %c0_21 = arith.constant 0 : index
      %c0_22 = arith.constant 0 : index
      %44 = vector.load %arg9[%c0_21, %c0_22] : memref<2x16xf32, #tpu.memory_space<vmem>>, vector<2x16xf32>
      tpu.vector_store %arg9[%c0_21, %c0_22], %43 {strides = array<i32>} : memref<2x16xf32, #tpu.memory_space<vmem>>, vector<2x16xf32>,
    } else {
    }
    return
  }
  func.func @transform_0(%arg0: i32, %arg1: i32) -> (i32, i32) {
    %c0_i32 = arith.constant 0 : i32
    %c0_i32_0 = arith.constant 0 : i32
    return %arg0, %c0_i32 : i32, i32
  }
  func.func @transform_1(%arg0: i32, %arg1: i32) -> (i32, i32, i32) {
    %c0_i32 = arith.constant 0 : i32
    %c0_i32_0 = arith.constant 0 : i32
    return %arg1, %arg0, %c0_i32 : i32, i32, i32
  }
  func.func @transform_2(%arg0: i32, %arg1: i32) -> (i32, i32) {
    %c0_i32 = arith.constant 0 : i32
    %c0_i32_0 = arith.constant 0 : i32
    return %arg0, %c0_i32 : i32, i32
  }
  func.func @transform_3(%arg0: i32, %arg1: i32) -> (i32, i32) {
    %c0_i32 = arith.constant 0 : i32
    %c0_i32_0 = arith.constant 0 : i32
    %c0_i32_1 = arith.constant 0 : i32
    return %c0_i32, %c0_i32_0 : i32, i32
  }
  func.func @transform_4(%arg0: i32, %arg1: i32) -> (i32, i32) {
    %c0_i32 = arith.constant 0 : i32
    %c0_i32_0 = arith.constant 0 : i32
    %c0_i32_1 = arith.constant 0 : i32
    return %c0_i32, %c0_i32_0 : i32, i32
  }
  func.func @transform_5(%arg0: i32, %arg1: i32) -> (i32, i32) {
    %c0_i32 = arith.constant 0 : i32
    %c0_i32_0 = arith.constant 0 : i32
    %c0_i32_1 = arith.constant 0 : i32
    return %c0_i32, %c0_i32_0 : i32, i32
  }
  func.func @transform_6(%arg0: i32, %arg1: i32) -> (i32, i32) {
    %c0_i32 = arith.constant 0 : i32
    %c0_i32_0 = arith.constant 0 : i32
    %c0_i32_1 = arith.constant 0 : i32
    return %c0_i32, %c0_i32_0 : i32, i32
  }
  func.func @transform_7(%arg0: i32, %arg1: i32) -> (i32, i32) {
    %c0_i32 = arith.constant 0 : i32
    %c0_i32_0 = arith.constant 0 : i32
    return %arg0, %c0_i32 : i32, i32
  }
}

</mosaic_0001>

<llo_original>
// kernel: tpu_custom_call.1
$region0: #{tpu_custom_call.1}
  #allocation0 [shape = 'u32[]', space=smem, size = 0x4, offset = 0x4, fixed_abs, tag = 'smem constant byte address 0x4 - core index']
  #allocation1 [shape = 'u32[72,128]{1,0:T(1,128)}', space=vmem, size = 0x9000, scoped, tag = 'internal scratch']
  #allocation2 [shape = 'f32[2,32]{1,0:T(2,128)}', space=vmem, size = 0x400, scoped, tag = 'scratch operand']
  #allocation3 [shape = 'f32[16,2]{1,0:T(8,128)}', space=vmem, size = 0x2000, scoped, tag = 'scratch operand']
  %s0 = inlined_call_operand.hbm [shape: f32[2,32], index: 0, kind: input, shape index: {}]
  %s1 = inlined_call_operand.hbm [shape: f32[16,2,32], index: 1, kind: input, shape index: {}]
  %s2 = inlined_call_operand.hbm [shape: s32[2,16], index: 2, kind: input, shape index: {}]
  %s3 = inlined_call_operand.hbm [shape: f32[32,32], index: 3, kind: input, shape index: {}]
  %s4 = inlined_call_operand.hbm [shape: f32[32,32], index: 4, kind: input, shape index: {}]
  %s5 = inlined_call_operand.vmem [shape: f32[1,32], index: 5, kind: input, shape index: {}]
  %s6 = inlined_call_operand.vmem [shape: f32[1,32], index: 6, kind: input, shape index: {}]
  %s7 = inlined_call_operand.hbm [shape: f32[2,16], index: 7, kind: output, shape index: {}]
  %s8 = sld [smem:[#allocation0]]
  $region89: #{tpu_custom_call.1} parent=0
    _
  %s10 = ssub.s32 1, %s8
  %s11 = scalar_select 0, %s10, %s8
  $region1: #{tpu_custom_call.1} parent=0
    #allocation4 [shape = 'u8[1024]{0}', space=vmem, size = 0x400, scoped, tag = 'input window, operand 0, single buffered']
    #allocation5 [shape = 's32[2]{0}', space=sflag, size = 0x8, scoped, tag = 'scoped memory for tpu_custom_call.1']
    #allocation6 [shape = 's32[2]{0}', space=sflag, size = 0x8, scoped, tag = 'scoped memory for tpu_custom_call.1']
    #allocation7 [shape = 'u8[16384]{0}', space=vmem, size = 0x4000, scoped, tag = 'input window, operand 1']
    #allocation8 [shape = 's32[2]{0}', space=sflag, size = 0x8, scoped, tag = 'scoped memory for tpu_custom_call.1']
    #allocation9 [shape = 'u8[1024]{0}', space=vmem, size = 0x400, scoped, tag = 'input window, operand 2, single buffered']
    #allocation10 [shape = 'u8[16384]{0}', space=vmem, size = 0x4000, scoped, tag = 'input window, operand 3, single buffered']
    #allocation11 [shape = 's32[1]{0}', space=sflag, size = 0x4, scoped, tag = 'scoped memory for tpu_custom_call.1']
    #allocation12 [shape = 'u8[16384]{0}', space=vmem, size = 0x4000, scoped, tag = 'input window, operand 4, single buffered']
    #allocation13 [shape = 'u8[1024]{0}', space=vmem, size = 0x400, scoped, tag = 'output window, operand 0, single buffered']
    %12 = vsyncpa [#allocation5], 0
    %13 = vsyncpa [#allocation8], 0
    %s14 = scalar_lea.sflag [#allocation8], 1
    %15 = vsyncpa %s14, 0
    %16 = vsyncpa [#allocation11], 0
    %17 = vsyncpa [#allocation6], 0
    loop: start=0, step=1, limit=4
    $region2: #{tpu_custom_call.1} parent=1 // loop_pre_header
      _
    $region3: #{tpu_custom_call.1} parent=1 // loop_header
      %s19 = sphi 0, %s23
      %p20 = scmp.ge.s32.totalorder %s19, 4
      %s26 = sphi 0, %s38
      %s27 = sphi 0, %s34
      %s28 = sphi 0, %s26
      %s29 = sphi 0, %s27
      %s30 = sphi 0, %s28
      %s31 = sphi 0, %s29
      %s41 = sphi 0, %s43
      %s44 = sphi 0, %s41
      %s45 = sphi 0, %s44
      %s61 = sphi 0, %s45
      %s69 = sphi 0, %s71
      %s72 = sphi 0, %s69
      %s73 = sphi 0, %s72
      %s89 = sphi 0, %s73
      %s95 = sphi 0, %s97
      %s98 = sphi 0, %s95
      %s99 = sphi 0, %s98
      %s115 = sphi 0, %s99
      %s119 = sphi 0, %s119
      %s121 = sphi 0, %s119
      %s122 = sphi 0, %s121
      %s136 = sphi 0, %s122
      %s140 = sphi 0, %s140
      %s142 = sphi 0, %s140
      %s143 = sphi 0, %s142
      %s157 = sphi 0, %s143
      %s161 = sphi 0, %s161
      %s163 = sphi 0, %s161
      %s164 = sphi 0, %s163
      %s178 = sphi 0, %s164
      %s182 = sphi 0, %s182
      %s184 = sphi 0, %s182
      %s185 = sphi 0, %s184
      %s199 = sphi 0, %s185
      %s205 = sphi 0, %s207
      %s208 = sphi 0, %s205
      %s209 = sphi 0, %s208
      %s225 = sphi 0, %s209
    $region4: #{tpu_custom_call.1} parent=1 // loop_header_branch
      %22 = sbr.rel (%p20) target = $region8
    $region5: #{tpu_custom_call.1} parent=1 // loop_body
      %s24 = ssub.s32 %s19, 1
      %s25 = ssub.s32 %s19, 2
      %s32 = sadd.s32 1, %s27
      %p33 = scmp.ge.s32.totalorder %s32, 2
      %s34 = scalar_select %p33, 0, %s32
      %s35 = sadd.s32 1, %s26
      %s36 = scalar_select %p33, %s35, %s26
      %p37 = scmp.ge.s32.totalorder %s36, 1
      %s38 = scalar_select %p37, 0, %s36
      %s39 = ssub.s32 %s26, %s38
      %p40 = scmp.eq.s32.totalorder %s39, 0
      %s42 = sadd.s32 %s41, 1
      %s43 = scalar_select %p40, %s41, %s42
      %p46 = pneg %p40
      %p47 = scmp.eq.s32.totalorder %s19, 1
      %p48 = por %p46, %p47
      %p49 = scmp.ne.s32.totalorder %s41, %s44
      %p50 = scmp.eq.s32.totalorder %s19, 0
      %p51 = por %p49, %p50
      %p52 = scmp.ne.s32.totalorder %s41, %s44
      %p53 = scmp.eq.s32.totalorder %s24, 1
      %p54 = por %p52, %p53
      %p55 = scmp.ne.s32.totalorder %s44, %s45
      %p56 = scmp.eq.s32.totalorder %s24, 0
      %p57 = por %p55, %p56
      %p58 = scmp.ne.s32.totalorder %s44, %s45
      %p59 = scmp.eq.s32.totalorder %s25, 1
      %p60 = por %p58, %p59
      %p62 = scmp.ne.s32.totalorder %s45, %s61
      %p63 = scmp.eq.s32.totalorder %s25, 0
      %p64 = por %p62, %p63
      %s65 = ssub.s32 %s27, %s34
      %s66 = ssub.s32 %s26, %s38
      %s67 = sor.u32 %s65, %s66
      %p68 = scmp.eq.s32.totalorder %s67, 0
      %s70 = sadd.s32 %s69, 1
      %s71 = scalar_select %p68, %s69, %s70
      %p74 = pneg %p68
      %p75 = scmp.eq.s32.totalorder %s19, 1
      %p76 = por %p74, %p75
      %p77 = scmp.ne.s32.totalorder %s69, %s72
      %p78 = scmp.eq.s32.totalorder %s19, 0
      %p79 = por %p77, %p78
      %p80 = scmp.ne.s32.totalorder %s69, %s72
      %p81 = scmp.eq.s32.totalorder %s24, 1
      %p82 = por %p80, %p81
      %p83 = scmp.ne.s32.totalorder %s72, %s73
      %p84 = scmp.eq.s32.totalorder %s24, 0
      %p85 = por %p83, %p84
      %p86 = scmp.ne.s32.totalorder %s72, %s73
      %p87 = scmp.eq.s32.totalorder %s25, 1
      %p88 = por %p86, %p87
      %p90 = scmp.ne.s32.totalorder %s73, %s89
      %p91 = scmp.eq.s32.totalorder %s25, 0
      %p92 = por %p90, %p91
      %s93 = ssub.s32 %s26, %s38
      %p94 = scmp.eq.s32.totalorder %s93, 0
      %s96 = sadd.s32 %s95, 1
      %s97 = scalar_select %p94, %s95, %s96
      %p100 = pneg %p94
      %p101 = scmp.eq.s32.totalorder %s19, 1
      %p102 = por %p100, %p101
      %p103 = scmp.ne.s32.totalorder %s95, %s98
      %p104 = scmp.eq.s32.totalorder %s19, 0
      %p105 = por %p103, %p104
      %p106 = scmp.ne.s32.totalorder %s95, %s98
      %p107 = scmp.eq.s32.totalorder %s24, 1
      %p108 = por %p106, %p107
      %p109 = scmp.ne.s32.totalorder %s98, %s99
      %p110 = scmp.eq.s32.totalorder %s24, 0
      %p111 = por %p109, %p110
      %p112 = scmp.ne.s32.totalorder %s98, %s99
      %p113 = scmp.eq.s32.totalorder %s25, 1
      %p114 = por %p112, %p113
      %p116 = scmp.ne.s32.totalorder %s99, %s115
      %p117 = scmp.eq.s32.totalorder %s25, 0
      %p118 = por %p116, %p117
      %s120 = sadd.s32 %s119, 1
      %p123 = scmp.eq.s32.totalorder %s19, 1
      %p124 = scmp.ne.s32.totalorder %s119, %s121
      %p125 = scmp.eq.s32.totalorder %s19, 0
      %p126 = por %p124, %p125
      %p127 = scmp.ne.s32.totalorder %s119, %s121
      %p128 = scmp.eq.s32.totalorder %s24, 1
      %p129 = por %p127, %p128
      %p130 = scmp.ne.s32.totalorder %s121, %s122
      %p131 = scmp.eq.s32.totalorder %s24, 0
      %p132 = por %p130, %p131
      %p133 = scmp.ne.s32.totalorder %s121, %s122
      %p134 = scmp.eq.s32.totalorder %s25, 1
      %p135 = por %p133, %p134
      %p137 = scmp.ne.s32.totalorder %s122, %s136
      %p138 = scmp.eq.s32.totalorder %s25, 0
      %p139 = por %p137, %p138
      %s141 = sadd.s32 %s140, 1
      %p144 = scmp.eq.s32.totalorder %s19, 1
      %p145 = scmp.ne.s32.totalorder %s140, %s142
      %p146 = scmp.eq.s32.totalorder %s19, 0
      %p147 = por %p145, %p146
      %p148 = scmp.ne.s32.totalorder %s140, %s142
      %p149 = scmp.eq.s32.totalorder %s24, 1
      %p150 = por %p148, %p149
      %p151 = scmp.ne.s32.totalorder %s142, %s143
      %p152 = scmp.eq.s32.totalorder %s24, 0
      %p153 = por %p151, %p152
      %p154 = scmp.ne.s32.totalorder %s142, %s143
      %p155 = scmp.eq.s32.totalorder %s25, 1
      %p156 = por %p154, %p155
      %p158 = scmp.ne.s32.totalorder %s143, %s157
      %p159 = scmp.eq.s32.totalorder %s25, 0
      %p160 = por %p158, %p159
      %s162 = sadd.s32 %s161, 1
      %p165 = scmp.eq.s32.totalorder %s19, 1
      %p166 = scmp.ne.s32.totalorder %s161, %s163
      %p167 = scmp.eq.s32.totalorder %s19, 0
      %p168 = por %p166, %p167
      %p169 = scmp.ne.s32.totalorder %s161, %s163
      %p170 = scmp.eq.s32.totalorder %s24, 1
      %p171 = por %p169, %p170
      %p172 = scmp.ne.s32.totalorder %s163, %s164
      %p173 = scmp.eq.s32.totalorder %s24, 0
      %p174 = por %p172, %p173
      %p175 = scmp.ne.s32.totalorder %s163, %s164
      %p176 = scmp.eq.s32.totalorder %s25, 1
      %p177 = por %p175, %p176
      %p179 = scmp.ne.s32.totalorder %s164, %s178
      %p180 = scmp.eq.s32.totalorder %s25, 0
      %p181 = por %p179, %p180
      %s183 = sadd.s32 %s182, 1
      %p186 = scmp.eq.s32.totalorder %s19, 1
      %p187 = scmp.ne.s32.totalorder %s182, %s184
      %p188 = scmp.eq.s32.totalorder %s19, 0
      %p189 = por %p187, %p188
      %p190 = scmp.ne.s32.totalorder %s182, %s184
      %p191 = scmp.eq.s32.totalorder %s24, 1
      %p192 = por %p190, %p191
      %p193 = scmp.ne.s32.totalorder %s184, %s185
      %p194 = scmp.eq.s32.totalorder %s24, 0
      %p195 = por %p193, %p194
      %p196 = scmp.ne.s32.totalorder %s184, %s185
      %p197 = scmp.eq.s32.totalorder %s25, 1
      %p198 = por %p196, %p197
      %p200 = scmp.ne.s32.totalorder %s185, %s199
      %p201 = scmp.eq.s32.totalorder %s25, 0
      %p202 = por %p200, %p201
      %s203 = ssub.s32 %s26, %s38
      %p204 = scmp.eq.s32.totalorder %s203, 0
      %s206 = sadd.s32 %s205, 1
      %s207 = scalar_select %p204, %s205, %s206
      %p210 = pneg %p204
      %p211 = scmp.eq.s32.totalorder %s19, 1
      %p212 = por %p210, %p211
      %p213 = scmp.ne.s32.totalorder %s205, %s208
      %p214 = scmp.eq.s32.totalorder %s19, 0
      %p215 = por %p213, %p214
      %p216 = scmp.ne.s32.totalorder %s205, %s208
      %p217 = scmp.eq.s32.totalorder %s24, 1
      %p218 = por %p216, %p217
      %p219 = scmp.ne.s32.totalorder %s208, %s209
      %p220 = scmp.eq.s32.totalorder %s24, 0
      %p221 = por %p219, %p220
      %p222 = scmp.ne.s32.totalorder %s208, %s209
      %p223 = scmp.eq.s32.totalorder %s25, 1
      %p224 = por %p222, %p223
      %p226 = scmp.ne.s32.totalorder %s209, %s225
      %p227 = scmp.eq.s32.totalorder %s25, 0
      %p228 = por %p226, %p227
      %p229 = scmp.le.s32.totalorder 1, %s19
      %p230 = scmp.lt.s32.totalorder %s19, 3
      %p231 = pnand %p229, %p230
      %p232 = pneg %p231
      // Predicated region
      $region9: #{tpu_custom_call.1} parent=5 // pred_check
        _
      $region10: #{tpu_custom_call.1} parent=5 // pred_check_branch
        %234 = sbr.rel (%p231) target = $region12
      $region11: #{tpu_custom_call.1} parent=5 // pred_region
        %s235 = ssub.s32 %s19, 1
        // Predicated region
        $region13: #{tpu_custom_call.1} parent=11 // pred_check
          %p236 = pneg %p57
        $region14: #{tpu_custom_call.1} parent=11 // pred_check_branch
          %238 = sbr.rel (%p236) target = $region16
        $region15: #{tpu_custom_call.1} parent=11 // pred_region
          %240 = vsyncadd [#allocation5], 0
          %s241 = smul.addr %s28, 2
          %s242 = scalar_lea.hbm %s0, %s241
          %s244 = sshll.u32 %s242, 4
          %s245 = int_to_ptr.hbm [resolvable:$true] %s244
          %s246 = sshll.u32 [#allocation4], 4
          %s247 = int_to_ptr.vmem [resolvable:$true] %s246
          %249 = dma.hbm_to_vmem [thread:$0]  %s245, 32, %s247, [#allocation5]
        $region16: #{tpu_custom_call.1} parent=11 // pred_fallthru
          _
        // Predicated region
        $region17: #{tpu_custom_call.1} parent=11 // pred_check
          %p250 = pneg %p111
        $region18: #{tpu_custom_call.1} parent=11 // pred_check_branch
          %252 = sbr.rel (%p250) target = $region20
        $region19: #{tpu_custom_call.1} parent=11 // pred_region
          %254 = vsyncadd [#allocation8], 0
          %s255 = smul.addr %s28, 2
          %s256 = scalar_lea.hbm %s2, %s255
          %s258 = sshll.u32 %s256, 4
          %s259 = int_to_ptr.hbm [resolvable:$true] %s258
          %s260 = sshll.u32 [#allocation9], 4
          %s261 = int_to_ptr.vmem [resolvable:$true] %s260
          %263 = dma.hbm_to_vmem [thread:$0]  %s259, 32, %s261, [#allocation8]
        $region20: #{tpu_custom_call.1} parent=11 // pred_fallthru
          _
        // Predicated region
        $region21: #{tpu_custom_call.1} parent=11 // pred_check
          %p264 = pneg %p132
        $region22: #{tpu_custom_call.1} parent=11 // pred_check_branch
          %266 = sbr.rel (%p264) target = $region24
        $region23: #{tpu_custom_call.1} parent=11 // pred_region
          %268 = vsyncadd [#allocation11], 0
          %s269 = sshll.u32 %s3, 4
          %s270 = int_to_ptr.hbm [resolvable:$true] %s269
          %s271 = sshll.u32 [#allocation10], 4
          %s272 = int_to_ptr.vmem [resolvable:$true] %s271
          %277 = dma.hbm_to_vmem [thread:$0]  %s270, 512, %s272, [#allocation11], 128, 128, 8
        $region24: #{tpu_custom_call.1} parent=11 // pred_fallthru
          _
        // Predicated region
        $region25: #{tpu_custom_call.1} parent=11 // pred_check
          %p278 = pneg %p153
        $region26: #{tpu_custom_call.1} parent=11 // pred_check_branch
          %280 = sbr.rel (%p278) target = $region28
        $region27: #{tpu_custom_call.1} parent=11 // pred_region
          %282 = vsyncadd [#allocation11], 0
          %s283 = sshll.u32 %s4, 4
          %s284 = int_to_ptr.hbm [resolvable:$true] %s283
          %s285 = sshll.u32 [#allocation12], 4
          %s286 = int_to_ptr.vmem [resolvable:$true] %s285
          %291 = dma.hbm_to_vmem [thread:$0]  %s284, 512, %s286, [#allocation11], 128, 128, 8
        $region28: #{tpu_custom_call.1} parent=11 // pred_fallthru
          _
        // Predicated region
        $region29: #{tpu_custom_call.1} parent=11 // pred_check
          %p292 = pneg %p174
        $region30: #{tpu_custom_call.1} parent=11 // pred_check_branch
          %294 = sbr.rel (%p292) target = $region32
        $region31: #{tpu_custom_call.1} parent=11 // pred_region
          _
        $region32: #{tpu_custom_call.1} parent=11 // pred_fallthru
          _
        // Predicated region
        $region33: #{tpu_custom_call.1} parent=11 // pred_check
          %p295 = pneg %p195
        $region34: #{tpu_custom_call.1} parent=11 // pred_check_branch
          %297 = sbr.rel (%p295) target = $region36
        $region35: #{tpu_custom_call.1} parent=11 // pred_region
          _
        $region36: #{tpu_custom_call.1} parent=11 // pred_fallthru
          _
      $region12: #{tpu_custom_call.1} parent=5 // pred_fallthru
        _
      %p298 = scmp.lt.s32.totalorder %s19, 2
      // Predicated region
      $region37: #{tpu_custom_call.1} parent=5 // pred_check
        %p299 = pneg %p298
      $region38: #{tpu_custom_call.1} parent=5 // pred_check_branch
        %301 = sbr.rel (%p299) target = $region40
      $region39: #{tpu_custom_call.1} parent=5 // pred_region
        // Predicated region
        $region41: #{tpu_custom_call.1} parent=39 // pred_check
          %p302 = pneg %p79
        $region42: #{tpu_custom_call.1} parent=39 // pred_check_branch
          %304 = sbr.rel (%p302) target = $region44
        $region43: #{tpu_custom_call.1} parent=39 // pred_region
          %s305 = sand.u32 %s19, 1
          %s306 = scalar_lea.sflag [#allocation8], %s305
          %s307 = sand.u32 %s69, 1
          %s308 = smul.addr %s307, 16
          %s309 = scalar_lea.vmem [#allocation7], %s308
          %s310 = smul.u32 8, %s27
          %312 = vsyncadd %s306, 0
          %s313 = sadd.s32 %s26, %s310
          %s314 = smul.addr %s313, 2
          %s315 = scalar_lea.hbm %s1, %s314
          %s316 = sshll.u32 %s315, 4
          %s317 = int_to_ptr.hbm [resolvable:$true] %s316
          %s318 = sshll.u32 %s309, 4
          %s319 = int_to_ptr.vmem [resolvable:$true] %s318
          %324 = dma.hbm_to_vmem [thread:$0]  %s317, 256, %s319, %s306, 32, 32, 2
        $region44: #{tpu_custom_call.1} parent=39 // pred_fallthru
          _
      $region40: #{tpu_custom_call.1} parent=5 // pred_fallthru
        _
      %p325 = scmp.le.s32.totalorder 1, %s19
      %p326 = scmp.lt.s32.totalorder %s19, 3
      %p327 = pnand %p325, %p326
      %p328 = pneg %p327
      // Predicated region
      $region45: #{tpu_custom_call.1} parent=5 // pred_check
        _
      $region46: #{tpu_custom_call.1} parent=5 // pred_check_branch
        %330 = sbr.rel (%p327) target = $region48
      $region47: #{tpu_custom_call.1} parent=5 // pred_region
        %s331 = ssub.s32 %s19, 1
        // Predicated region
        $region49: #{tpu_custom_call.1} parent=47 // pred_check
          %p332 = pneg %p57
        $region50: #{tpu_custom_call.1} parent=47 // pred_check_branch
          %334 = sbr.rel (%p332) target = $region52
        $region51: #{tpu_custom_call.1} parent=47 // pred_region
          %336 = dma.done [#allocation5], 32
        $region52: #{tpu_custom_call.1} parent=47 // pred_fallthru
          _
        %s337 = sand.u32 %s24, 1
        %s338 = scalar_lea.sflag [#allocation8], %s337
        %s339 = sand.u32 %s72, 1
        %s340 = smul.addr %s339, 16
        %s341 = scalar_lea.vmem [#allocation7], %s340
        // Predicated region
        $region53: #{tpu_custom_call.1} parent=47 // pred_check
          %p342 = pneg %p85
        $region54: #{tpu_custom_call.1} parent=47 // pred_check_branch
          %344 = sbr.rel (%p342) target = $region56
        $region55: #{tpu_custom_call.1} parent=47 // pred_region
          %346 = dma.done %s338, 256
        $region56: #{tpu_custom_call.1} parent=47 // pred_fallthru
          _
        // Predicated region
        $region57: #{tpu_custom_call.1} parent=47 // pred_check
          %p347 = pneg %p111
        $region58: #{tpu_custom_call.1} parent=47 // pred_check_branch
          %349 = sbr.rel (%p347) target = $region60
        $region59: #{tpu_custom_call.1} parent=47 // pred_region
          %351 = dma.done [#allocation8], 32
        $region60: #{tpu_custom_call.1} parent=47 // pred_fallthru
          _
        // Predicated region
        $region61: #{tpu_custom_call.1} parent=47 // pred_check
          %p352 = pneg %p132
        $region62: #{tpu_custom_call.1} parent=47 // pred_check_branch
          %354 = sbr.rel (%p352) target = $region64
        $region63: #{tpu_custom_call.1} parent=47 // pred_region
          %356 = dma.done [#allocation11], 512
        $region64: #{tpu_custom_call.1} parent=47 // pred_fallthru
          _
        // Predicated region
        $region65: #{tpu_custom_call.1} parent=47 // pred_check
          %p357 = pneg %p153
        $region66: #{tpu_custom_call.1} parent=47 // pred_check_branch
          %359 = sbr.rel (%p357) target = $region68
        $region67: #{tpu_custom_call.1} parent=47 // pred_region
          %361 = dma.done [#allocation11], 512
        $region68: #{tpu_custom_call.1} parent=47 // pred_fallthru
          _
        %p362 = pneg %p57
        %p363 = pneg %p54
        %s364 = sand.u32 %s24, 1
        %s365 = scalar_lea.sflag [#allocation8], %s364
        %s366 = sand.u32 %s72, 1
        %s367 = smul.addr %s366, 16
        %s368 = scalar_lea.vmem [#allocation7], %s367
        %p369 = pneg %p85
        %p370 = pneg %p82
        %p371 = pneg %p111
        %p372 = pneg %p108
        %p373 = pneg %p132
        %p374 = pneg %p129
        %p375 = pneg %p153
        %p376 = pneg %p150
        %p377 = pneg %p174
        %p378 = pneg %p171
        %p379 = pneg %p195
        %p380 = pneg %p192
        %p381 = pneg %p221
        %p382 = pneg %p218
        %s383 = smul.u32 8, %s29
        %p384 = scmp.eq.s32.totalorder %s29, 0
        // Predicated region
        $region69: #{tpu_custom_call.1} parent=47 // pred_check
          %p385 = pneg %p384
        $region70: #{tpu_custom_call.1} parent=47 // pred_check_branch
          %387 = sbr.rel (%p385) target = $region72
        $region71: #{tpu_custom_call.1} parent=47 // pred_region
          %v388 = vld [vmem:[#allocation4] sm:$0x3]
          %v389 = vld [vmem:[#allocation10] sm:$0xff]
          %v390 = vld [vmem:[#allocation10 + $0x8] sm:$0xff]
          %v391 = vld [vmem:[#allocation10 + $0x10] sm:$0xff]
          %v392 = vld [vmem:[#allocation10 + $0x18] sm:$0xff]
          %v393 = vld [vmem:[%s5] sm:$0x1]
          %v395 = vperm.slane %v393, 0
          %vm397 = vcmask 261120
          %v399 = vsel %vm397, %v388, 0
          %v402 = vsel %vm397, %v389, 0
          %v405 = vsel %vm397, %v390, 0
          %v408 = vsel %vm397, %v391, 0
          %v411 = vsel %vm397, %v392, 0
          %413 = vmatpush.xpose.msra.mxu0 0.0
          %414 = vmatpush.xpose.msra.mxu0 0.0
          %415 = vmatpush.xpose.msra.mxu0 0.0
          %416 = vmatpush.xpose.msra.mxu0 0.0
          %417 = vmatpush.xpose.msra.mxu0 0.0
          %418 = vmatpush.xpose.msra.mxu0 0.0
          %419 = vmatpush.xpose.msra.mxu0 0.0
          %420 = vmatpush.xpose.msra.mxu0 0.0
          %421 = vmatpush.xpose.msra.mxu0 0.0
          %422 = vmatpush.xpose.msra.mxu0 0.0
          %423 = vmatpush.xpose.msra.mxu0 0.0
          %424 = vmatpush.xpose.msra.mxu0 0.0
          %425 = vmatpush.xpose.msra.mxu0 %v411
          %426 = vmatpush.xpose.msra.mxu0 %v408
          %427 = vmatpush.xpose.msra.mxu0 %v405
          %428 = vmatpush.xpose.msra.mxu0 %v402
          %429 = vmatmul.f32.gmra.mxu0 %v399
          %v430 = vpop.f32.mrf.mxu0
          %v431 = vadd.f32 %v395, %v430
          %432 = vdwg.mxu0
          %vm433 = vcmask 254976
          %434 = vst.msk [vmem:[#allocation2] sm:$0x3] %vm433, %v431
        $region72: #{tpu_custom_call.1} parent=47 // pred_fallthru
          _
        %v435 = vld [vmem:[%s341] sm:$0x3]
        %v436 = vld [vmem:[%s341 + $0x2] sm:$0x3]
        %v437 = vld [vmem:[%s341 + $0x4] sm:$0x3]
        %v438 = vld [vmem:[%s341 + $0x6] sm:$0x3]
        %v439 = vld [vmem:[%s341 + $0x8] sm:$0x3]
        %v440 = vld [vmem:[%s341 + $0xa] sm:$0x3]
        %v441 = vld [vmem:[%s341 + $0xc] sm:$0x3]
        %v442 = vld [vmem:[%s341 + $0xe] sm:$0x3]
        %v443 = vld [vmem:[#allocation12] sm:$0xff]
        %v444 = vld [vmem:[#allocation12 + $0x8] sm:$0xff]
        %v445 = vld [vmem:[#allocation12 + $0x10] sm:$0xff]
        %v446 = vld [vmem:[#allocation12 + $0x18] sm:$0xff]
        %v447 = vld [vmem:[#allocation2] sm:$0x3]
        %456 = vst [vmem:[#allocation1] ss:$4 sm:$0xff] %v435
        %s457 = scalar_lea.vmem [#allocation1], 1
        %458 = vst [vmem:[%s457] ss:$4 sm:$0xff] %v436
        %s459 = scalar_lea.vmem [#allocation1], 2
        %460 = vst [vmem:[%s459] ss:$4 sm:$0xff] %v437
        %s461 = scalar_lea.vmem [#allocation1], 3
        %462 = vst [vmem:[%s461] ss:$4 sm:$0xff] %v438
        %s463 = scalar_lea.vmem [#allocation1], 32
        %464 = vst [vmem:[%s463] ss:$4 sm:$0xff] %v439
        %s465 = scalar_lea.vmem [#allocation1], 33
        %466 = vst [vmem:[%s465] ss:$4 sm:$0xff] %v440
        %s467 = scalar_lea.vmem [#allocation1], 34
        %468 = vst [vmem:[%s467] ss:$4 sm:$0xff] %v441
        %s469 = scalar_lea.vmem [#allocation1], 35
        %470 = vst [vmem:[%s469] ss:$4 sm:$0xff] %v442
        %v471 = vld.sshfl [vmem:[#allocation1] sm:$0xff pattern:$0x73625140]
        %v472 = vld.sshfl [vmem:[#allocation1 + $0x20] sm:$0xff pattern:$0x73625140]
        %474 = vst [vmem:[#allocation1] ss:$4 sm:$0xff] %v447
        %s475 = scalar_lea.vmem [#allocation1], 1
        %476 = vst [vmem:[%s475] ss:$4 sm:$0xff] %v447
        %s477 = scalar_lea.vmem [#allocation1], 2
        %478 = vst [vmem:[%s477] ss:$4 sm:$0xff] %v447
        %s479 = scalar_lea.vmem [#allocation1], 3
        %480 = vst [vmem:[%s479] ss:$4 sm:$0xff] %v447
        %s481 = scalar_lea.vmem [#allocation1], 32
        %482 = vst [vmem:[%s481] ss:$4 sm:$0xff] %v447
        %s483 = scalar_lea.vmem [#allocation1], 33
        %484 = vst [vmem:[%s483] ss:$4 sm:$0xff] %v447
        %s485 = scalar_lea.vmem [#allocation1], 34
        %486 = vst [vmem:[%s485] ss:$4 sm:$0xff] %v447
        %s487 = scalar_lea.vmem [#allocation1], 35
        %488 = vst [vmem:[%s487] ss:$4 sm:$0xff] %v447
        %v489 = vld.sshfl [vmem:[#allocation1] sm:$0xff pattern:$0x73625140]
        %v490 = vld.sshfl [vmem:[#allocation1 + $0x20] sm:$0xff pattern:$0x73625140]
        %vm493 = vcmask 261120
        %v494 = vsel %vm493, %v471, 0
        %v496 = vsel %vm493, %v472, 0
        %498 = vmatpush.msra.mxu0 0.0
        %499 = vmatpush.msra.mxu0 0.0
        %500 = vmatpush.msra.mxu0 0.0
        %501 = vmatpush.msra.mxu0 0.0
        %502 = vmatpush.msra.mxu0 0.0
        %503 = vmatpush.msra.mxu0 0.0
        %504 = vmatpush.msra.mxu0 0.0
        %505 = vmatpush.msra.mxu0 0.0
        %506 = vmatpush.msra.mxu0 0.0
        %507 = vmatpush.msra.mxu0 0.0
        %508 = vmatpush.msra.mxu0 0.0
        %509 = vmatpush.msra.mxu0 0.0
        %510 = vmatpush.msra.mxu0 %v446
        %511 = vmatpush.msra.mxu0 %v445
        %512 = vmatpush.msra.mxu0 %v444
        %513 = vmatpush.msra.mxu0 %v443
        %514 = vmatmul.f32.gmra.mxu0 %v494
        %v515 = vpop.f32.mrf.mxu0
        %v516 = vadd.f32 %v489, %v515
        %517 = vmatmul.f32.gmra.mxu0 %v496
        %v518 = vpop.f32.mrf.mxu0
        %v519 = vadd.f32 %v490, %v518
        %520 = vdwg.mxu0
        %v523 = vrot.slane %v516, 2
        %v524 = vrot.slane %v516, 4
        %v525 = vrot.slane %v516, 6
        %v526 = vrot.slane %v519, 2
        %v527 = vrot.slane %v519, 4
        %v528 = vrot.slane %v519, 6
        %v535 = vtanh.pop %v516
        %v536 = vtanh.pop %v523
        %v537 = vtanh.pop %v524
        %v538 = vtanh.pop %v525
        %v539 = vtanh.pop %v519
        %v540 = vtanh.pop %v526
        %v541 = vtanh.pop %v527
        %v542 = vtanh.pop %v528
        %v543 = vld [vmem:[%s6] sm:$0x1]
        %v545 = vperm.slane %v543, 0
        %v547 = vmul.f32 %v535, %v545
        %v548 = vmul.f32 %v536, %v545
        %v549 = vmul.f32 %v537, %v545
        %v550 = vmul.f32 %v538, %v545
        %v551 = vmul.f32 %v539, %v545
        %v552 = vmul.f32 %v540, %v545
        %v553 = vmul.f32 %v541, %v545
        %v554 = vmul.f32 %v542, %v545
        %vm555 = vcmask 254976
        %v556 = vsel %vm555, %v547, 0.0
        %557 = vadd.xlane.f32.xlu0 %v556
        %v558 = vpop.xlane.xlu0 %557
        %v559 = vsel %vm555, %v548, 0.0
        %560 = vadd.xlane.f32.xlu0 %v559
        %v561 = vpop.xlane.xlu0 %560
        %v562 = vsel %vm555, %v549, 0.0
        %563 = vadd.xlane.f32.xlu0 %v562
        %v564 = vpop.xlane.xlu0 %563
        %v565 = vsel %vm555, %v550, 0.0
        %566 = vadd.xlane.f32.xlu0 %v565
        %v567 = vpop.xlane.xlu0 %566
        %v568 = vsel %vm555, %v551, 0.0
        %569 = vadd.xlane.f32.xlu0 %v568
        %v570 = vpop.xlane.xlu0 %569
        %v571 = vsel %vm555, %v552, 0.0
        %572 = vadd.xlane.f32.xlu0 %v571
        %v573 = vpop.xlane.xlu0 %572
        %v574 = vsel %vm555, %v553, 0.0
        %575 = vadd.xlane.f32.xlu0 %v574
        %v576 = vpop.xlane.xlu0 %575
        %v577 = vsel %vm555, %v554, 0.0
        %578 = vadd.xlane.f32.xlu0 %v577
        %v579 = vpop.xlane.xlu0 %578
        %s580 = smul.u32 %s29, 8
        %v589 = vlaneseq
        %v590 = vand.u32 %v589, 127
        %v591 = vperm.slane %v558, %v590
        %v592 = vperm.slane %v561, %v590
        %v593 = vperm.slane %v564, %v590
        %v594 = vperm.slane %v567, %v590
        %v595 = vperm.slane %v570, %v590
        %v596 = vperm.slane %v573, %v590
        %v597 = vperm.slane %v576, %v590
        %v598 = vperm.slane %v579, %v590
        %vm599 = vcmask 1041409
        %v600 = vsel %vm599, %v592, %v591
        %vm601 = vcmask 1042434
        %v602 = vsel %vm601, %v593, %v600
        %vm603 = vcmask 1043459
        %v604 = vsel %vm603, %v594, %v602
        %vm605 = vcmask 1044484
        %v606 = vsel %vm605, %v595, %v604
        %vm607 = vcmask 1045509
        %v608 = vsel %vm607, %v596, %v606
        %vm609 = vcmask 1046534
        %v610 = vsel %vm609, %v597, %v608
        %vm611 = vcmask 1047559
        %v612 = vsel %vm611, %v598, %v610
        %s614 = scalar_lea.vmem [#allocation3], %s580
        %vm615 = vcmask 15360
        %616 = vst.msk [vmem:[%s614] sm:$0xff] %vm615, %v612
        %p617 = scmp.eq.s32.totalorder %s29, 1
        // Predicated region
        $region73: #{tpu_custom_call.1} parent=47 // pred_check
          %p618 = pneg %p617
        $region74: #{tpu_custom_call.1} parent=47 // pred_check_branch
          %620 = sbr.rel (%p618) target = $region76
        $region75: #{tpu_custom_call.1} parent=47 // pred_region
          %v621 = vld [vmem:[#allocation3] sm:$0xff]
          %v622 = vld [vmem:[#allocation3 + $0x8] sm:$0xff]
          %623 = vxpose.xlu0.b32.start [1/16] %v621, 128
          %624 = vxpose.xlu0.b32.cont [2/16] %v622, 128
          %625 = vxpose.xlu0.b32.cont [3/16] 0.0, 128
          %626 = vxpose.xlu0.b32.cont [4/16] 0.0, 128
          %627 = vxpose.xlu0.b32.cont [5/16] 0.0, 128
          %628 = vxpose.xlu0.b32.cont [6/16] 0.0, 128
          %629 = vxpose.xlu0.b32.cont [7/16] 0.0, 128
          %630 = vxpose.xlu0.b32.cont [8/16] 0.0, 128
          %631 = vxpose.xlu0.b32.cont [9/16] 0.0, 128
          %632 = vxpose.xlu0.b32.cont [10/16] 0.0, 128
          %633 = vxpose.xlu0.b32.cont [11/16] 0.0, 128
          %634 = vxpose.xlu0.b32.cont [12/16] 0.0, 128
          %635 = vxpose.xlu0.b32.cont [13/16] 0.0, 128
          %636 = vxpose.xlu0.b32.cont [14/16] 0.0, 128
          %637 = vxpose.xlu0.b32.cont [15/16] 0.0, 128
          %638 = vxpose.xlu0.b32.end [16/16] 0.0, 128
          %v639 = vpop.trf.xlu0
          %v640 = vpop.trf.xlu0
          %v641 = vpop.trf.xlu0
          %v642 = vpop.trf.xlu0
          %v643 = vpop.trf.xlu0
          %v644 = vpop.trf.xlu0
          %v645 = vpop.trf.xlu0
          %v646 = vpop.trf.xlu0
          %v647 = vpop.trf.xlu0
          %v648 = vpop.trf.xlu0
          %v649 = vpop.trf.xlu0
          %v650 = vpop.trf.xlu0
          %v651 = vpop.trf.xlu0
          %v652 = vpop.trf.xlu0
          %v653 = vpop.trf.xlu0
          %v654 = vpop.trf.xlu0
          %v655 = vld [vmem:[#allocation9] sm:$0x3]
          %vm656 = vcmp.eq.s32.totalorder %v655, 0
          %v657 = vsel %vm656, -1e+10, %v639
          %vm658 = vcmask 123904
          %v659 = vsel %vm658, %v657, -inf
          %660 = vmax.xlane.f32.xlu0 %v659
          %v661 = vpop.xlane.xlu0 %660
          %v662 = vsub.f32 %v657, %v661
          %v663 = vmul.f32 %v662, 1.442695
          %v664 = vpow.pop %v663
          %v665 = vsel %vm658, %v664, 0.0
          %666 = vadd.xlane.f32.xlu0 %v665
          %v667 = vpop.xlane.xlu0 %666
          %v668 = vrcp.pop %v667
          %v669 = vmul.f32 %v667, %v668
          %v670 = vsub.f32 2.0, %v669
          %v671 = vmul.f32 %v668, %v670
          %v672 = vmul.f32 %v664, %v671
          %673 = vst.msk [vmem:[#allocation13] sm:$0x3] %vm658, %v672
        $region76: #{tpu_custom_call.1} parent=47 // pred_fallthru
          _
        // Predicated region
        $region77: #{tpu_custom_call.1} parent=47 // pred_check
          %p674 = pneg %p218
        $region78: #{tpu_custom_call.1} parent=47 // pred_check_branch
          %676 = sbr.rel (%p674) target = $region80
        $region79: #{tpu_custom_call.1} parent=47 // pred_region
          %678 = vsyncadd [#allocation6], 0
          %s679 = smul.addr %s28, 2
          %s680 = scalar_lea.hbm %s7, %s679
          %s682 = sshll.u32 [#allocation13], 4
          %s683 = int_to_ptr.vmem [resolvable:$true] %s682
          %s684 = sshll.u32 %s680, 4
          %s685 = int_to_ptr.hbm [resolvable:$true] %s684
          %687 = dma.vmem_to_hbm [thread:$0]  %s683, 32, %s685, [#allocation6]
        $region80: #{tpu_custom_call.1} parent=47 // pred_fallthru
          _
        // Predicated region
        $region81: #{tpu_custom_call.1} parent=47 // pred_check
          %p688 = pneg %p218
        $region82: #{tpu_custom_call.1} parent=47 // pred_check_branch
          %690 = sbr.rel (%p688) target = $region84
        $region83: #{tpu_custom_call.1} parent=47 // pred_region
          %692 = dma.done [#allocation6], 32
        $region84: #{tpu_custom_call.1} parent=47 // pred_fallthru
          _
      $region48: #{tpu_custom_call.1} parent=5 // pred_fallthru
        _
      %p693 = scmp.le.s32.totalorder 2, %s19
      // Predicated region
      $region85: #{tpu_custom_call.1} parent=5 // pred_check
        %p694 = pneg %p693
      $region86: #{tpu_custom_call.1} parent=5 // pred_check_branch
        %696 = sbr.rel (%p694) target = $region88
      $region87: #{tpu_custom_call.1} parent=5 // pred_region
        %s697 = ssub.s32 %s19, 2
      $region88: #{tpu_custom_call.1} parent=5 // pred_fallthru
        _
    $region6: #{tpu_custom_call.1} parent=1 // loop_footer
      %s23 = sadd.s32 1, %s19
    $region7: #{tpu_custom_call.1} parent=1 // loop_footer_branch
      %18 = sbr.rel target = $region3
    $region8: #{tpu_custom_call.1} parent=1 // loop_exit
      _
    %698 = vsyncpa [#allocation5], 1
    %s699 = scalar_lea.sflag [#allocation5], 1
    %700 = vsyncpa %s699, 1
    %701 = vsyncpa [#allocation8], 1
    %s702 = scalar_lea.sflag [#allocation8], 1
    %703 = vsyncpa %s702, 1
    %704 = vsyncpa [#allocation11], 1
    %705 = vsyncpa [#allocation6], 1
    %s706 = scalar_lea.sflag [#allocation6], 1
    %707 = vsyncpa %s706, 1

</llo_original>
